<compile_context>
chip_gen: v5e
topology: v5e:2x2
jax: 0.10.0
libtpu: 0.0.40
codegen_flags: <defaults>
</compile_context>

<pallas_src>
import functools

import jax
import jax.numpy as jnp
from jax.experimental import pallas as pl
from jax.experimental.pallas import tpu as pltpu

BN_EPS = 1e-5
LANE = 128      # lane (last-dim) alignment
SUBLANE = 8     # f32 sublane alignment


def _round_up(v: int, m: int) -> int:
    return (v + m - 1) // m * m


def _make_mlp_kernel(num_hidden: int, true_batch: int, batch_pad: int):
    """Fused kernel: `num_hidden` (Linear+BN+ReLU) blocks + Linear head + ReLU."""
    inv_n = 1.0 / float(true_batch)
    needs_mask = true_batch != batch_pad

    def kernel(*refs):
        x_ref = refs[0]
        o_ref = refs[-1]
        params = refs[1:-1]

        # Row mask for the BN batch statistics (padding rows excluded).
        if needs_mask:
            ones_row = (jax.lax.broadcasted_iota(jnp.int32, (1, batch_pad), 1)
                        < true_batch).astype(jnp.float32)
        else:
            ones_row = jnp.ones((1, batch_pad), jnp.float32)

        h = x_ref[...].astype(jnp.bfloat16)          # (B_pad, D_pad) bf16 MXU operand
        idx = 0
        for _ in range(num_hidden):
            w_ref, g_ref, beta_ref = params[idx:idx + 3]
            idx += 3
            # Linear. Bias omitted on purpose: BatchNorm re-centers right after,
            # so the Linear bias cancels exactly. bf16 operands, f32 accumulate.
            z = jnp.dot(h, w_ref[...], preferred_element_type=jnp.float32)
            # Train-mode BN statistics via masked ones-row matmuls (MXU slot,
            # avoids an XLU sublane reduction).
            s1 = jnp.dot(ones_row, z, preferred_element_type=jnp.float32)       # (1, D)
            s2 = jnp.dot(ones_row, z * z, preferred_element_type=jnp.float32)   # (1, D)
            mean = s1 * inv_n
            var = jnp.maximum(s2 * inv_n - mean * mean, 0.0)   # biased variance
            scale = g_ref[...] * jax.lax.rsqrt(var + BN_EPS)
            shift = beta_ref[...] - mean * scale
            # Fused BN affine + ReLU + bf16 cast for the next MXU matmul.
            h = jnp.maximum(z * scale + shift, 0.0).astype(jnp.bfloat16)

        # Final Linear head (bias kept: no BN after it); forward() then applies
        # the activation (ReLU) to the logits.
        w_ref, b_ref = params[idx], params[idx + 1]
        logits = jnp.dot(h, w_ref[...], preferred_element_type=jnp.float32) + b_ref[...]
        o_ref[...] = jnp.maximum(logits, 0.0).astype(o_ref.dtype)

    return kernel


def prepare_params(params, input_dim, hidden_dims, output_dim):
    """One-time padding / bf16 conversion of the flat torch-style parameter list.

    Input layout : [w0,b0,g0,beta0, w1,b1,g1,beta1, ..., w_out,b_out]
    Output layout: [w0,g0,beta0, w1,g1,beta1, ..., w_out,b_out]  (hidden biases
    dropped — they cancel through BatchNorm), all lane-padded to 128.
    """
    padded = []
    d_prev_pad = _round_up(input_dim, LANE)
    idx = 0
    for h_dim in hidden_dims:
        w, _b, g, beta = params[idx:idx + 4]
        idx += 4
        d_out_pad = _round_up(h_dim, LANE)
        w_pad = jnp.zeros((d_prev_pad, d_out_pad), jnp.bfloat16).at[
            :w.shape[0], :h_dim].set(w.astype(jnp.bfloat16))
        g_pad = jnp.ones((1, d_out_pad), jnp.float32).at[:, :h_dim].set(g.reshape(1, -1))
        beta_pad = jnp.zeros((1, d_out_pad), jnp.float32).at[:, :h_dim].set(
            beta.reshape(1, -1))
        padded += [w_pad, g_pad, beta_pad]
        d_prev_pad = d_out_pad
    w_out, b_out = params[idx], params[idx + 1]
    d_final_pad = _round_up(output_dim, LANE)
    w_out_pad = jnp.zeros((d_prev_pad, d_final_pad), jnp.bfloat16).at[
        :w_out.shape[0], :output_dim].set(w_out.astype(jnp.bfloat16))
    b_out_pad = jnp.zeros((1, d_final_pad), jnp.float32).at[:, :output_dim].set(
        b_out.reshape(1, -1))
    padded += [w_out_pad, b_out_pad]
    return padded


@functools.partial(jax.jit, static_argnames=("num_hidden", "output_dim"))
def mlp_forward(x, padded_params, *, num_hidden, output_dim):
    """padded_params: output of prepare_params()."""
    n, d_in = x.shape
    n_pad = _round_up(n, SUBLANE)
    d_in_pad = padded_params[0].shape[0]
    d_final_pad = padded_params[-1].shape[1]

    # Zero-padded, lane-aligned input.
    x_pad = jnp.pad(x.astype(jnp.float32), ((0, n_pad - n), (0, d_in_pad - d_in)))

    kernel_args = [x_pad] + list(padded_params)

    # Advisory cost estimate (all padded shapes; static under jit).
    flops = 0
    transcendentals = 0
    d_prev = d_in_pad
    for li in range(num_hidden):
        d_out = padded_params[3 * li].shape[1]
        flops += 2 * n_pad * d_prev * d_out        # main matmul
        flops += 2 * 2 * n_pad * d_out             # two ones-row reductions
        flops += 7 * n_pad * d_out                 # z*z + fused BN affine + ReLU
        transcendentals += d_out                   # rsqrt per feature
        d_prev = d_out
    flops += 2 * n_pad * d_prev * d_final_pad + 2 * n_pad * d_final_pad
    in_bytes = sum(int(a.size) * a.dtype.itemsize for a in kernel_args)
    bytes_accessed = in_bytes + n_pad * d_final_pad * 4

    # Everything (params + activations) is VMEM-resident in this fused,
    # grid-less kernel; make the budget explicit (v7x only has 64 MiB VMEM).
    # TODO(synk): for large batch / hidden sizes, add a batch grid axis with a
    # two-pass cross-tile BN sum/sum_sq reduction and stream weights via
    # pltpu.emit_pipeline instead of whole-array residency.
    vmem_limit = int(min(48 * 2**20, max(4 * 2**20, 4 * bytes_accessed)))

    kernel = _make_mlp_kernel(num_hidden, n, n_pad)
    vmem = pl.BlockSpec(memory_space=pltpu.MemorySpace.VMEM)
    out_pad = pl.pallas_call(
        kernel,
        out_shape=jax.ShapeDtypeStruct((n_pad, d_final_pad), jnp.float32),
        in_specs=[vmem] * len(kernel_args),
        out_specs=vmem,
        compiler_params=pltpu.CompilerParams(vmem_limit_bytes=vmem_limit),
        cost_estimate=pl.CostEstimate(
            flops=int(flops),
            transcendentals=int(transcendentals),
            bytes_accessed=int(bytes_accessed)),
    )(*kernel_args)
    # Slice off batch / feature padding (lane-dense store inside the kernel).
    return out_pad[:n, :output_dim]


def init_params(key, input_dim, hidden_dims, output_dim):
    """Deterministic synthetic parameters (shapes match the torch module)."""
    params = []
    dims = [input_dim] + list(hidden_dims)
    for i in range(len(hidden_dims)):
        d_in, d_out = dims[i], dims[i + 1]
        key, kw, kb = jax.random.split(key, 3)
        w = jax.random.normal(kw, (d_in, d_out), jnp.float32) * 0.1   # (in, out)
        b = jax.random.normal(kb, (1, d_out), jnp.float32) * 0.1
        gamma = jnp.ones((1, d_out), jnp.float32)    # torch BN default
        beta = jnp.zeros((1, d_out), jnp.float32)    # torch BN default
        params += [w, b, gamma, beta]
    key, kw, kb = jax.random.split(key, 3)
    w_out = jax.random.normal(kw, (hidden_dims[-1], output_dim), jnp.float32) * 0.1
    b_out = jax.random.normal(kb, (1, output_dim), jnp.float32) * 0.1
    params += [w_out, b_out]
    return params


def mlp_reference(x, params, num_hidden):
    """Pure-JAX reference mirroring the torch module math (Linear with bias,
    train-mode BatchNorm1d with biased variance, ReLU, final Linear + ReLU).
    Matmul operands are cast to bf16 to match the kernel's MXU precision."""
    h = x.astype(jnp.float32)
    idx = 0
    for _ in range(num_hidden):
        w, b, g, beta = params[idx:idx + 4]
        idx += 4
        z = jnp.dot(h.astype(jnp.bfloat16), w.astype(jnp.bfloat16),
                    preferred_element_type=jnp.float32) + b.reshape(1, -1)
        mean = jnp.mean(z, axis=0, keepdims=True)
        var = jnp.mean((z - mean) ** 2, axis=0, keepdims=True)   # biased variance
        z_hat = (z - mean) * jax.lax.rsqrt(var + BN_EPS)
        h = jnp.maximum(g.reshape(1, -1) * z_hat + beta.reshape(1, -1), 0.0)
    w, b = params[idx], params[idx + 1]
    logits = jnp.dot(h.astype(jnp.bfloat16), w.astype(jnp.bfloat16),
                     preferred_element_type=jnp.float32) + b.reshape(1, -1)
    return jnp.maximum(logits, 0.0)


if __name__ == "__main__":
    # Small, module-consistent shapes.
    batch = 8
    input_dim = 16
    hidden_dims = [32, 64]
    output_dim = 8

    key = jax.random.PRNGKey(0)
    key, kx = jax.random.split(key)
    x = jax.random.normal(kx, (batch, input_dim), jnp.float32)

    params = init_params(key, input_dim, hidden_dims, output_dim)
    padded_params = prepare_params(params, input_dim, hidden_dims, output_dim)

    out = mlp_forward(x, padded_params,
                      num_hidden=len(hidden_dims), output_dim=output_dim)
    out = jax.block_until_ready(out)

    ref = mlp_reference(x, params, num_hidden=len(hidden_dims))
    assert out.shape == (batch, output_dim)
    assert jnp.allclose(out, ref, atol=2e-3, rtol=2e-3), "mismatch vs reference"

    print("KERNEL_OK")
</pallas_src>

<mosaic_0001>
module attributes {stable_mosaic.version = 11 : i64} {
  func.func @kernel(%arg0: memref<8x128xf32, #tpu.memory_space<vmem>>, %arg1: memref<128x128xbf16, #tpu.memory_space<vmem>>, %arg2: memref<1x128xf32, #tpu.memory_space<vmem>>, %arg3: memref<1x128xf32, #tpu.memory_space<vmem>>, %arg4: memref<128x128xbf16, #tpu.memory_space<vmem>>, %arg5: memref<1x128xf32, #tpu.memory_space<vmem>>, %arg6: memref<1x128xf32, #tpu.memory_space<vmem>>, %arg7: memref<128x128xbf16, #tpu.memory_space<vmem>>, %arg8: memref<1x128xf32, #tpu.memory_space<vmem>>, %arg9: memref<8x128xf32, #tpu.memory_space<vmem>>) attributes {dimension_semantics = [], scalar_prefetch = 0 : i64, scratch_operands = 0 : i64, tpu.core_type = #tpu.core_type<tc>} {
    %cst = arith.constant 1.000000e+00 : f32
    %0 = vector.broadcast %cst : f32 to vector<1x8xf32>
    %c0 = arith.constant 0 : index
    %c0_0 = arith.constant 0 : index
    %1 = vector.load %arg0[%c0, %c0_0] : memref<8x128xf32, #tpu.memory_space<vmem>>, vector<8x128xf32>
    %2 = arith.truncf %1 : vector<8x128xf32> to vector<8x128xbf16>
    %c0_1 = arith.constant 0 : index
    %c0_2 = arith.constant 0 : index
    %3 = vector.load %arg1[%c0_1, %c0_2] : memref<128x128xbf16, #tpu.memory_space<vmem>>, vector<128x128xbf16>
    %cst_3 = arith.constant dense<0.000000e+00> : vector<8x128xf32>
    %4 = tpu.matmul %2, %3, %cst_3 {dimension_numbers = #tpu.dot_dimension_numbers<[1], [0], [0], [1], [0, 0, 1, 1], [], []>} : vector<8x128xbf16>, vector<128x128xbf16>, vector<8x128xf32> -> vector<8x128xf32>
    %cst_4 = arith.constant dense<0.000000e+00> : vector<1x128xf32>
    %5 = tpu.matmul %0, %4, %cst_4 {dimension_numbers = #tpu.dot_dimension_numbers<[1], [0], [0], [1], [0, 0, 1, 1], [], []>} : vector<1x8xf32>, vector<8x128xf32>, vector<1x128xf32> -> vector<1x128xf32>
    %6 = arith.mulf %4, %4 : vector<8x128xf32>
    %cst_5 = arith.constant dense<0.000000e+00> : vector<1x128xf32>
    %7 = tpu.matmul %0, %6, %cst_5 {dimension_numbers = #tpu.dot_dimension_numbers<[1], [0], [0], [1], [0, 0, 1, 1], [], []>} : vector<1x8xf32>, vector<8x128xf32>, vector<1x128xf32> -> vector<1x128xf32>
    %cst_6 = arith.constant 1.250000e-01 : f32
    %8 = vector.broadcast %cst_6 : f32 to vector<1x128xf32>
    %9 = arith.mulf %5, %8 : vector<1x128xf32>
    %cst_7 = arith.constant 1.250000e-01 : f32
    %10 = vector.broadcast %cst_7 : f32 to vector<1x128xf32>
    %11 = arith.mulf %7, %10 : vector<1x128xf32>
    %12 = arith.mulf %9, %9 : vector<1x128xf32>
    %13 = arith.subf %11, %12 : vector<1x128xf32>
    %cst_8 = arith.constant 0.000000e+00 : f32
    %14 = vector.broadcast %cst_8 : f32 to vector<1x128xf32>
    %15 = arith.maximumf %13, %14 : vector<1x128xf32>
    %c0_9 = arith.constant 0 : index
    %c0_10 = arith.constant 0 : index
    %16 = vector.load %arg2[%c0_9, %c0_10] : memref<1x128xf32, #tpu.memory_space<vmem>>, vector<1x128xf32>
    %cst_11 = arith.constant 9.99999974E-6 : f32
    %17 = vector.broadcast %cst_11 : f32 to vector<1x128xf32>
    %18 = arith.addf %15, %17 : vector<1x128xf32>
    %19 = math.rsqrt %18 : vector<1x128xf32>
    %20 = arith.mulf %16, %19 : vector<1x128xf32>
    %c0_12 = arith.constant 0 : index
    %c0_13 = arith.constant 0 : index
    %21 = vector.load %arg3[%c0_12, %c0_13] : memref<1x128xf32, #tpu.memory_space<vmem>>, vector<1x128xf32>
    %22 = arith.mulf %9, %20 : vector<1x128xf32>
    %23 = arith.subf %21, %22 : vector<1x128xf32>
    %24 = vector.broadcast %20 : vector<1x128xf32> to vector<8x128xf32>
    %25 = arith.mulf %4, %24 : vector<8x128xf32>
    %26 = vector.broadcast %23 : vector<1x128xf32> to vector<8x128xf32>
    %27 = arith.addf %25, %26 : vector<8x128xf32>
    %cst_14 = arith.constant 0.000000e+00 : f32
    %28 = vector.broadcast %cst_14 : f32 to vector<8x128xf32>
    %29 = arith.maximumf %27, %28 : vector<8x128xf32>
    %30 = arith.truncf %29 : vector<8x128xf32> to vector<8x128xbf16>
    %c0_15 = arith.constant 0 : index
    %c0_16 = arith.constant 0 : index
    %31 = vector.load %arg4[%c0_15, %c0_16] : memref<128x128xbf16, #tpu.memory_space<vmem>>, vector<128x128xbf16>
    %cst_17 = arith.constant dense<0.000000e+00> : vector<8x128xf32>
    %32 = tpu.matmul %30, %31, %cst_17 {dimension_numbers = #tpu.dot_dimension_numbers<[1], [0], [0], [1], [0, 0, 1, 1], [], []>} : vector<8x128xbf16>, vector<128x128xbf16>, vector<8x128xf32> -> vector<8x128xf32>
    %cst_18 = arith.constant dense<0.000000e+00> : vector<1x128xf32>
    %33 = tpu.matmul %0, %32, %cst_18 {dimension_numbers = #tpu.dot_dimension_numbers<[1], [0], [0], [1], [0, 0, 1, 1], [], []>} : vector<1x8xf32>, vector<8x128xf32>, vector<1x128xf32> -> vector<1x128xf32>
    %34 = arith.mulf %32, %32 : vector<8x128xf32>
    %cst_19 = arith.constant dense<0.000000e+00> : vector<1x128xf32>
    %35 = tpu.matmul %0, %34, %cst_19 {dimension_numbers = #tpu.dot_dimension_numbers<[1], [0], [0], [1], [0, 0, 1, 1], [], []>} : vector<1x8xf32>, vector<8x128xf32>, vector<1x128xf32> -> vector<1x128xf32>
    %cst_20 = arith.constant 1.250000e-01 : f32
    %36 = vector.broadcast %cst_20 : f32 to vector<1x128xf32>
    %37 = arith.mulf %33, %36 : vector<1x128xf32>
    %cst_21 = arith.constant 1.250000e-01 : f32
    %38 = vector.broadcast %cst_21 : f32 to vector<1x128xf32>
    %39 = arith.mulf %35, %38 : vector<1x128xf32>
    %40 = arith.mulf %37, %37 : vector<1x128xf32>
    %41 = arith.subf %39, %40 : vector<1x128xf32>
    %cst_22 = arith.constant 0.000000e+00 : f32
    %42 = vector.broadcast %cst_22 : f32 to vector<1x128xf32>
    %43 = arith.maximumf %41, %42 : vector<1x128xf32>
    %c0_23 = arith.constant 0 : index
    %c0_24 = arith.constant 0 : index
    %44 = vector.load %arg5[%c0_23, %c0_24] : memref<1x128xf32, #tpu.memory_space<vmem>>, vector<1x128xf32>
    %cst_25 = arith.constant 9.99999974E-6 : f32
    %45 = vector.broadcast %cst_25 : f32 to vector<1x128xf32>
    %46 = arith.addf %43, %45 : vector<1x128xf32>
    %47 = math.rsqrt %46 : vector<1x128xf32>
    %48 = arith.mulf %44, %47 : vector<1x128xf32>
    %c0_26 = arith.constant 0 : index
    %c0_27 = arith.constant 0 : index
    %49 = vector.load %arg6[%c0_26, %c0_27] : memref<1x128xf32, #tpu.memory_space<vmem>>, vector<1x128xf32>
    %50 = arith.mulf %37, %48 : vector<1x128xf32>
    %51 = arith.subf %49, %50 : vector<1x128xf32>
    %52 = vector.broadcast %48 : vector<1x128xf32> to vector<8x128xf32>
    %53 = arith.mulf %32, %52 : vector<8x128xf32>
    %54 = vector.broadcast %51 : vector<1x128xf32> to vector<8x128xf32>
    %55 = arith.addf %53, %54 : vector<8x128xf32>
    %cst_28 = arith.constant 0.000000e+00 : f32
    %56 = vector.broadcast %cst_28 : f32 to vector<8x128xf32>
    %57 = arith.maximumf %55, %56 : vector<8x128xf32>
    %58 = arith.truncf %57 : vector<8x128xf32> to vector<8x128xbf16>
    %c0_29 = arith.constant 0 : index
    %c0_30 = arith.constant 0 : index
    %59 = vector.load %arg7[%c0_29, %c0_30] : memref<128x128xbf16, #tpu.memory_space<vmem>>, vector<128x128xbf16>
    %cst_31 = arith.constant dense<0.000000e+00> : vector<8x128xf32>
    %60 = tpu.matmul %58, %59, %cst_31 {dimension_numbers = #tpu.dot_dimension_numbers<[1], [0], [0], [1], [0, 0, 1, 1], [], []>} : vector<8x128xbf16>, vector<128x128xbf16>, vector<8x128xf32> -> vector<8x128xf32>
    %c0_32 = arith.constant 0 : index
    %c0_33 = arith.constant 0 : index
    %61 = vector.load %arg8[%c0_32, %c0_33] : memref<1x128xf32, #tpu.memory_space<vmem>>, vector<1x128xf32>
    %62 = vector.broadcast %61 : vector<1x128xf32> to vector<8x128xf32>
    %63 = arith.addf %60, %62 : vector<8x128xf32>
    %cst_34 = arith.constant 0.000000e+00 : f32
    %64 = vector.broadcast %cst_34 : f32 to vector<8x128xf32>
    %65 = arith.maximumf %63, %64 : vector<8x128xf32>
    %c0_35 = arith.constant 0 : index
    %c0_36 = arith.constant 0 : index
    %66 = vector.load %arg9[%c0_35, %c0_36] : memref<8x128xf32, #tpu.memory_space<vmem>>, vector<8x128xf32>
    tpu.vector_store %arg9[%c0_35, %c0_36], %65 {strides = array<i32>} : memref<8x128xf32, #tpu.memory_space<vmem>>, vector<8x128xf32>,
    return
  }
}

</mosaic_0001>

<llo_original>
// kernel: mlp_forward.1
$region0: #{mlp_forward.1}
  #allocation0 [shape = 'u32[]', space=smem, size = 0x4, offset = 0x4, fixed_abs, tag = 'smem constant byte address 0x4 - core index']
  #allocation1 [shape = 'u32[72,128]{1,0:T(1,128)}', space=vmem, size = 0x9000, scoped, tag = 'internal scratch']
  %s0 = inlined_call_operand.vmem [shape: f32[8,128], index: 0, kind: input, shape index: {}]
  %s1 = inlined_call_operand.hbm [shape: bf16[128,128], index: 1, kind: input, shape index: {}]
  %s2 = inlined_call_operand.vmem [shape: f32[1,128], index: 2, kind: input, shape index: {}]
  %s3 = inlined_call_operand.vmem [shape: f32[1,128], index: 3, kind: input, shape index: {}]
  %s4 = inlined_call_operand.hbm [shape: bf16[128,128], index: 4, kind: input, shape index: {}]
  %s5 = inlined_call_operand.vmem [shape: f32[1,128], index: 5, kind: input, shape index: {}]
  %s6 = inlined_call_operand.vmem [shape: f32[1,128], index: 6, kind: input, shape index: {}]
  %s7 = inlined_call_operand.hbm [shape: bf16[128,128], index: 7, kind: input, shape index: {}]
  %s8 = inlined_call_operand.vmem [shape: f32[1,128], index: 8, kind: input, shape index: {}]
  %s9 = inlined_call_operand.hbm [shape: f32[8,128], index: 9, kind: output, shape index: {}]
  %s10 = sld [smem:[#allocation0]]
  $region58: #{mlp_forward.1} parent=0
    _
  %s12 = ssub.s32 1, %s10
  %s13 = scalar_select 0, %s12, %s10
  $region1: #{mlp_forward.1} parent=0
    #allocation2 [shape = 'u8[32768]{0}', space=vmem, size = 0x8000, scoped, tag = 'input window, operand 1, single buffered']
    #allocation3 [shape = 's32[1]{0}', space=sflag, size = 0x4, scoped, tag = 'scoped memory for mlp_forward.1']
    #allocation4 [shape = 's32[1]{0}', space=sflag, size = 0x4, scoped, tag = 'scoped memory for mlp_forward.1']
    #allocation5 [shape = 'u8[32768]{0}', space=vmem, size = 0x8000, scoped, tag = 'input window, operand 4, single buffered']
    #allocation6 [shape = 's32[1]{0}', space=sflag, size = 0x4, scoped, tag = 'scoped memory for mlp_forward.1']
    #allocation7 [shape = 'u8[32768]{0}', space=vmem, size = 0x8000, scoped, tag = 'input window, operand 7, single buffered']
    #allocation8 [shape = 'u8[4096]{0}', space=vmem, size = 0x1000, scoped, tag = 'output window, operand 0, single buffered']
    %14 = vsyncpa [#allocation3], 0
    %15 = vsyncpa [#allocation6], 0
    %16 = vsyncpa [#allocation4], 0
    // Predicated region
    $region2: #{mlp_forward.1} parent=1 // pred_check
      _
    $region3: #{mlp_forward.1} parent=1 // pred_check_branch
      %18 = sbr.rel (0) target = $region5
    $region4: #{mlp_forward.1} parent=1 // pred_region
      _
    $region5: #{mlp_forward.1} parent=1 // pred_fallthru
      _
    // Predicated region
    $region6: #{mlp_forward.1} parent=1 // pred_check
      _
    $region7: #{mlp_forward.1} parent=1 // pred_check_branch
      %20 = sbr.rel (0) target = $region9
    $region8: #{mlp_forward.1} parent=1 // pred_region
      %22 = vsyncadd [#allocation3], 0
      %s23 = sshll.u32 %s1, 4
      %s24 = int_to_ptr.hbm [resolvable:$true] %s23
      %s25 = sshll.u32 [#allocation2], 4
      %s26 = int_to_ptr.vmem [resolvable:$true] %s25
      %31 = dma.hbm_to_vmem [thread:$0]  %s24, 1024, %s26, [#allocation3], 64, 64, 4
    $region9: #{mlp_forward.1} parent=1 // pred_fallthru
      _
    // Predicated region
    $region10: #{mlp_forward.1} parent=1 // pred_check
      _
    $region11: #{mlp_forward.1} parent=1 // pred_check_branch
      %33 = sbr.rel (0) target = $region13
    $region12: #{mlp_forward.1} parent=1 // pred_region
      _
    $region13: #{mlp_forward.1} parent=1 // pred_fallthru
      _
    // Predicated region
    $region14: #{mlp_forward.1} parent=1 // pred_check
      _
    $region15: #{mlp_forward.1} parent=1 // pred_check_branch
      %35 = sbr.rel (0) target = $region17
    $region16: #{mlp_forward.1} parent=1 // pred_region
      _
    $region17: #{mlp_forward.1} parent=1 // pred_fallthru
      _
    // Predicated region
    $region18: #{mlp_forward.1} parent=1 // pred_check
      _
    $region19: #{mlp_forward.1} parent=1 // pred_check_branch
      %37 = sbr.rel (0) target = $region21
    $region20: #{mlp_forward.1} parent=1 // pred_region
      %39 = vsyncadd [#allocation6], 0
      %s40 = sshll.u32 %s4, 4
      %s41 = int_to_ptr.hbm [resolvable:$true] %s40
      %s42 = sshll.u32 [#allocation5], 4
      %s43 = int_to_ptr.vmem [resolvable:$true] %s42
      %48 = dma.hbm_to_vmem [thread:$0]  %s41, 1024, %s43, [#allocation6], 64, 64, 4
    $region21: #{mlp_forward.1} parent=1 // pred_fallthru
      _
    // Predicated region
    $region22: #{mlp_forward.1} parent=1 // pred_check
      _
    $region23: #{mlp_forward.1} parent=1 // pred_check_branch
      %50 = sbr.rel (0) target = $region25
    $region24: #{mlp_forward.1} parent=1 // pred_region
      _
    $region25: #{mlp_forward.1} parent=1 // pred_fallthru
      _
    // Predicated region
    $region26: #{mlp_forward.1} parent=1 // pred_check
      _
    $region27: #{mlp_forward.1} parent=1 // pred_check_branch
      %52 = sbr.rel (0) target = $region29
    $region28: #{mlp_forward.1} parent=1 // pred_region
      _
    $region29: #{mlp_forward.1} parent=1 // pred_fallthru
      _
    // Predicated region
    $region30: #{mlp_forward.1} parent=1 // pred_check
      _
    $region31: #{mlp_forward.1} parent=1 // pred_check_branch
      %54 = sbr.rel (0) target = $region33
    $region32: #{mlp_forward.1} parent=1 // pred_region
      %56 = vsyncadd [#allocation6], 0
      %s57 = sshll.u32 %s7, 4
      %s58 = int_to_ptr.hbm [resolvable:$true] %s57
      %s59 = sshll.u32 [#allocation7], 4
      %s60 = int_to_ptr.vmem [resolvable:$true] %s59
      %65 = dma.hbm_to_vmem [thread:$0]  %s58, 1024, %s60, [#allocation6], 64, 64, 4
    $region33: #{mlp_forward.1} parent=1 // pred_fallthru
      _
    // Predicated region
    $region34: #{mlp_forward.1} parent=1 // pred_check
      _
    $region35: #{mlp_forward.1} parent=1 // pred_check_branch
      %67 = sbr.rel (0) target = $region37
    $region36: #{mlp_forward.1} parent=1 // pred_region
      _
    $region37: #{mlp_forward.1} parent=1 // pred_fallthru
      _
    // Predicated region
    $region38: #{mlp_forward.1} parent=1 // pred_check
      _
    $region39: #{mlp_forward.1} parent=1 // pred_check_branch
      %69 = sbr.rel (0) target = $region41
    $region40: #{mlp_forward.1} parent=1 // pred_region
      %71 = dma.done [#allocation3], 1024
    $region41: #{mlp_forward.1} parent=1 // pred_fallthru
      _
    // Predicated region
    $region42: #{mlp_forward.1} parent=1 // pred_check
      _
    $region43: #{mlp_forward.1} parent=1 // pred_check_branch
      %73 = sbr.rel (0) target = $region45
    $region44: #{mlp_forward.1} parent=1 // pred_region
      %75 = dma.done [#allocation6], 1024
    $region45: #{mlp_forward.1} parent=1 // pred_fallthru
      _
    // Predicated region
    $region46: #{mlp_forward.1} parent=1 // pred_check
      _
    $region47: #{mlp_forward.1} parent=1 // pred_check_branch
      %77 = sbr.rel (0) target = $region49
    $region48: #{mlp_forward.1} parent=1 // pred_region
      %79 = dma.done [#allocation6], 1024
    $region49: #{mlp_forward.1} parent=1 // pred_fallthru
      _
    %v80 = vld [vmem:[%s0] sm:$0xff]
    %v81 = vpack.c.bf16 %v80, %v80
    %v82 = vld [vmem:[#allocation2] sm:$0xf]
    %v83 = vld [vmem:[#allocation2 + $0x4] sm:$0xf]
    %v84 = vld [vmem:[#allocation2 + $0x8] sm:$0xf]
    %v85 = vld [vmem:[#allocation2 + $0xc] sm:$0xf]
    %v86 = vld [vmem:[#allocation2 + $0x10] sm:$0xf]
    %v87 = vld [vmem:[#allocation2 + $0x14] sm:$0xf]
    %v88 = vld [vmem:[#allocation2 + $0x18] sm:$0xf]
    %v89 = vld [vmem:[#allocation2 + $0x1c] sm:$0xf]
    %v90 = vld [vmem:[#allocation2 + $0x20] sm:$0xf]
    %v91 = vld [vmem:[#allocation2 + $0x24] sm:$0xf]
    %v92 = vld [vmem:[#allocation2 + $0x28] sm:$0xf]
    %v93 = vld [vmem:[#allocation2 + $0x2c] sm:$0xf]
    %v94 = vld [vmem:[#allocation2 + $0x30] sm:$0xf]
    %v95 = vld [vmem:[#allocation2 + $0x34] sm:$0xf]
    %v96 = vld [vmem:[#allocation2 + $0x38] sm:$0xf]
    %v97 = vld [vmem:[#allocation2 + $0x3c] sm:$0xf]
    %v114 = vunpack.c.l.b16 %v82
    %v115 = vunpack.c.l.b16 %v83
    %v116 = vunpack.c.l.b16 %v84
    %v117 = vunpack.c.l.b16 %v85
    %v118 = vunpack.c.l.b16 %v86
    %v119 = vunpack.c.l.b16 %v87
    %v120 = vunpack.c.l.b16 %v88
    %v121 = vunpack.c.l.b16 %v89
    %v122 = vunpack.c.l.b16 %v90
    %v123 = vunpack.c.l.b16 %v91
    %v124 = vunpack.c.l.b16 %v92
    %v125 = vunpack.c.l.b16 %v93
    %v126 = vunpack.c.l.b16 %v94
    %v127 = vunpack.c.l.b16 %v95
    %v128 = vunpack.c.l.b16 %v96
    %v129 = vunpack.c.l.b16 %v97
    %v130 = vpack.c.b16 %v115, %v114
    %v131 = vpack.c.b16 %v117, %v116
    %v132 = vpack.c.b16 %v119, %v118
    %v133 = vpack.c.b16 %v121, %v120
    %v134 = vpack.c.b16 %v123, %v122
    %v135 = vpack.c.b16 %v125, %v124
    %v136 = vpack.c.b16 %v127, %v126
    %v137 = vpack.c.b16 %v129, %v128
    %146 = vmatpush.bf16.msra.mxu0 %v137
    %147 = vmatpush.bf16.msra.mxu0 %v136
    %148 = vmatpush.bf16.msra.mxu0 %v135
    %149 = vmatpush.bf16.msra.mxu0 %v134
    %150 = vmatpush.bf16.msra.mxu0 %v133
    %151 = vmatpush.bf16.msra.mxu0 %v132
    %152 = vmatpush.bf16.msra.mxu0 %v131
    %153 = vmatpush.bf16.msra.mxu0 %v130
    %154 = vmatmul.bf16.gmra.mxu0 %v81
    %v155 = vpop.f32.mrf.mxu0
    %v156 = vadd.f32 0.0, %v155
    %v157 = vpop.f32.mrf.mxu0
    %158 = vdwg.mxu0
    %vm159 = vcmask 64512
    %v161 = vsel %vm159, 1.0, 0
    %163 = vmatpush.msra.mxu0 0.0
    %164 = vmatpush.msra.mxu0 0.0
    %165 = vmatpush.msra.mxu0 0.0
    %166 = vmatpush.msra.mxu0 0.0
    %167 = vmatpush.msra.mxu0 0.0
    %168 = vmatpush.msra.mxu0 0.0
    %169 = vmatpush.msra.mxu0 0.0
    %170 = vmatpush.msra.mxu0 0.0
    %171 = vmatpush.msra.mxu0 0.0
    %172 = vmatpush.msra.mxu0 0.0
    %173 = vmatpush.msra.mxu0 0.0
    %174 = vmatpush.msra.mxu0 0.0
    %175 = vmatpush.msra.mxu0 0.0
    %176 = vmatpush.msra.mxu0 0.0
    %177 = vmatpush.msra.mxu0 0.0
    %178 = vmatpush.msra.mxu0 %v156
    %179 = vmatmul.f32.gmra.mxu0 %v161
    %v180 = vpop.f32.mrf.mxu0
    %v181 = vadd.f32 0.0, %v180
    %182 = vdwg.mxu0
    %v183 = vmul.f32 %v156, %v156
    %184 = vmatpush.msra.mxu0 0.0
    %185 = vmatpush.msra.mxu0 0.0
    %186 = vmatpush.msra.mxu0 0.0
    %187 = vmatpush.msra.mxu0 0.0
    %188 = vmatpush.msra.mxu0 0.0
    %189 = vmatpush.msra.mxu0 0.0
    %190 = vmatpush.msra.mxu0 0.0
    %191 = vmatpush.msra.mxu0 0.0
    %192 = vmatpush.msra.mxu0 0.0
    %193 = vmatpush.msra.mxu0 0.0
    %194 = vmatpush.msra.mxu0 0.0
    %195 = vmatpush.msra.mxu0 0.0
    %196 = vmatpush.msra.mxu0 0.0
    %197 = vmatpush.msra.mxu0 0.0
    %198 = vmatpush.msra.mxu0 0.0
    %199 = vmatpush.msra.mxu0 %v183
    %200 = vmatmul.f32.gmra.mxu0 %v161
    %v201 = vpop.f32.mrf.mxu0
    %v202 = vadd.f32 0.0, %v201
    %203 = vdwg.mxu0
    %v204 = vmul.f32 %v181, 0.125
    %v205 = vmul.f32 %v202, 0.125
    %v206 = vmul.f32 %v204, %v204
    %v207 = vsub.f32 %v205, %v206
    %v208 = vmax.f32 %v207, 0.0
    %v209 = vld [vmem:[%s2] sm:$0x1]
    %v210 = vadd.f32 %v208, 1e-05
    %v211 = vrsqrt.pop %v210
    %v212 = vmul.f32 %v211, %v210
    %v213 = vmul.f32 %v212, %v211
    %v214 = vmul.f32 0.5, %v213
    %v215 = vsub.f32 1.5, %v214
    %v216 = vmul.f32 %v211, %v215
    %vm217 = vweird.f32 %v210
    %vm218 = vweird.f32 %v211
    %vm219 = vmor %vm217, %vm218
    %v220 = vsel %vm219, %v211, %v216
    %v221 = vmul.f32 %v209, %v220
    %v222 = vld [vmem:[%s3] sm:$0x1]
    %v223 = vmul.f32 %v204, %v221
    %v224 = vsub.f32 %v222, %v223
    %v226 = vperm.slane %v221, 0
    %v228 = vmul.f32 %v156, %v226
    %v230 = vperm.slane %v224, 0
    %v232 = vadd.f32 %v228, %v230
    %v233 = vmax.f32 %v232, 0.0
    %v234 = vpack.c.bf16 %v233, %v233
    %v235 = vld [vmem:[#allocation5] sm:$0xf]
    %v236 = vld [vmem:[#allocation5 + $0x4] sm:$0xf]
    %v237 = vld [vmem:[#allocation5 + $0x8] sm:$0xf]
    %v238 = vld [vmem:[#allocation5 + $0xc] sm:$0xf]
    %v239 = vld [vmem:[#allocation5 + $0x10] sm:$0xf]
    %v240 = vld [vmem:[#allocation5 + $0x14] sm:$0xf]
    %v241 = vld [vmem:[#allocation5 + $0x18] sm:$0xf]
    %v242 = vld [vmem:[#allocation5 + $0x1c] sm:$0xf]
    %v243 = vld [vmem:[#allocation5 + $0x20] sm:$0xf]
    %v244 = vld [vmem:[#allocation5 + $0x24] sm:$0xf]
    %v245 = vld [vmem:[#allocation5 + $0x28] sm:$0xf]
    %v246 = vld [vmem:[#allocation5 + $0x2c] sm:$0xf]
    %v247 = vld [vmem:[#allocation5 + $0x30] sm:$0xf]
    %v248 = vld [vmem:[#allocation5 + $0x34] sm:$0xf]
    %v249 = vld [vmem:[#allocation5 + $0x38] sm:$0xf]
    %v250 = vld [vmem:[#allocation5 + $0x3c] sm:$0xf]
    %v267 = vunpack.c.l.b16 %v235
    %v268 = vunpack.c.l.b16 %v236
    %v269 = vunpack.c.l.b16 %v237
    %v270 = vunpack.c.l.b16 %v238
    %v271 = vunpack.c.l.b16 %v239
    %v272 = vunpack.c.l.b16 %v240
    %v273 = vunpack.c.l.b16 %v241
    %v274 = vunpack.c.l.b16 %v242
    %v275 = vunpack.c.l.b16 %v243
    %v276 = vunpack.c.l.b16 %v244
    %v277 = vunpack.c.l.b16 %v245
    %v278 = vunpack.c.l.b16 %v246
    %v279 = vunpack.c.l.b16 %v247
    %v280 = vunpack.c.l.b16 %v248
    %v281 = vunpack.c.l.b16 %v249
    %v282 = vunpack.c.l.b16 %v250
    %v283 = vpack.c.b16 %v268, %v267
    %v284 = vpack.c.b16 %v270, %v269
    %v285 = vpack.c.b16 %v272, %v271
    %v286 = vpack.c.b16 %v274, %v273
    %v287 = vpack.c.b16 %v276, %v275
    %v288 = vpack.c.b16 %v278, %v277
    %v289 = vpack.c.b16 %v280, %v279
    %v290 = vpack.c.b16 %v282, %v281
    %299 = vmatpush.bf16.msra.mxu0 %v290
    %300 = vmatpush.bf16.msra.mxu0 %v289
    %301 = vmatpush.bf16.msra.mxu0 %v288
    %302 = vmatpush.bf16.msra.mxu0 %v287
    %303 = vmatpush.bf16.msra.mxu0 %v286
    %304 = vmatpush.bf16.msra.mxu0 %v285
    %305 = vmatpush.bf16.msra.mxu0 %v284
    %306 = vmatpush.bf16.msra.mxu0 %v283
    %307 = vmatmul.bf16.gmra.mxu0 %v234
    %v308 = vpop.f32.mrf.mxu0
    %v309 = vadd.f32 0.0, %v308
    %v310 = vpop.f32.mrf.mxu0
    %311 = vdwg.mxu0
    %312 = vmatpush.msra.mxu0 0.0
    %313 = vmatpush.msra.mxu0 0.0
    %314 = vmatpush.msra.mxu0 0.0
    %315 = vmatpush.msra.mxu0 0.0
    %316 = vmatpush.msra.mxu0 0.0
    %317 = vmatpush.msra.mxu0 0.0
    %318 = vmatpush.msra.mxu0 0.0
    %319 = vmatpush.msra.mxu0 0.0
    %320 = vmatpush.msra.mxu0 0.0
    %321 = vmatpush.msra.mxu0 0.0
    %322 = vmatpush.msra.mxu0 0.0
    %323 = vmatpush.msra.mxu0 0.0
    %324 = vmatpush.msra.mxu0 0.0
    %325 = vmatpush.msra.mxu0 0.0
    %326 = vmatpush.msra.mxu0 0.0
    %327 = vmatpush.msra.mxu0 %v309
    %328 = vmatmul.f32.gmra.mxu0 %v161
    %v329 = vpop.f32.mrf.mxu0
    %v330 = vadd.f32 0.0, %v329
    %331 = vdwg.mxu0
    %v332 = vmul.f32 %v309, %v309
    %333 = vmatpush.msra.mxu0 0.0
    %334 = vmatpush.msra.mxu0 0.0
    %335 = vmatpush.msra.mxu0 0.0
    %336 = vmatpush.msra.mxu0 0.0
    %337 = vmatpush.msra.mxu0 0.0
    %338 = vmatpush.msra.mxu0 0.0
    %339 = vmatpush.msra.mxu0 0.0
    %340 = vmatpush.msra.mxu0 0.0
    %341 = vmatpush.msra.mxu0 0.0
    %342 = vmatpush.msra.mxu0 0.0
    %343 = vmatpush.msra.mxu0 0.0
    %344 = vmatpush.msra.mxu0 0.0
    %345 = vmatpush.msra.mxu0 0.0
    %346 = vmatpush.msra.mxu0 0.0
    %347 = vmatpush.msra.mxu0 0.0
    %348 = vmatpush.msra.mxu0 %v332
    %349 = vmatmul.f32.gmra.mxu0 %v161
    %v350 = vpop.f32.mrf.mxu0
    %v351 = vadd.f32 0.0, %v350
    %352 = vdwg.mxu0
    %v353 = vmul.f32 %v330, 0.125
    %v354 = vmul.f32 %v351, 0.125
    %v355 = vmul.f32 %v353, %v353
    %v356 = vsub.f32 %v354, %v355
    %v357 = vmax.f32 %v356, 0.0
    %v358 = vld [vmem:[%s5] sm:$0x1]
    %v359 = vadd.f32 %v357, 1e-05
    %v360 = vrsqrt.pop %v359
    %v361 = vmul.f32 %v360, %v359
    %v362 = vmul.f32 %v361, %v360
    %v363 = vmul.f32 0.5, %v362
    %v364 = vsub.f32 1.5, %v363
    %v365 = vmul.f32 %v360, %v364
    %vm366 = vweird.f32 %v359
    %vm367 = vweird.f32 %v360
    %vm368 = vmor %vm366, %vm367
    %v369 = vsel %vm368, %v360, %v365
    %v370 = vmul.f32 %v358, %v369
    %v371 = vld [vmem:[%s6] sm:$0x1]
    %v372 = vmul.f32 %v353, %v370
    %v373 = vsub.f32 %v371, %v372
    %v375 = vperm.slane %v370, 0
    %v377 = vmul.f32 %v309, %v375
    %v379 = vperm.slane %v373, 0
    %v381 = vadd.f32 %v377, %v379
    %v382 = vmax.f32 %v381, 0.0
    %v383 = vpack.c.bf16 %v382, %v382
    %v384 = vld [vmem:[#allocation7] sm:$0xf]
    %v385 = vld [vmem:[#allocation7 + $0x4] sm:$0xf]
    %v386 = vld [vmem:[#allocation7 + $0x8] sm:$0xf]
    %v387 = vld [vmem:[#allocation7 + $0xc] sm:$0xf]
    %v388 = vld [vmem:[#allocation7 + $0x10] sm:$0xf]
    %v389 = vld [vmem:[#allocation7 + $0x14] sm:$0xf]
    %v390 = vld [vmem:[#allocation7 + $0x18] sm:$0xf]
    %v391 = vld [vmem:[#allocation7 + $0x1c] sm:$0xf]
    %v392 = vld [vmem:[#allocation7 + $0x20] sm:$0xf]
    %v393 = vld [vmem:[#allocation7 + $0x24] sm:$0xf]
    %v394 = vld [vmem:[#allocation7 + $0x28] sm:$0xf]
    %v395 = vld [vmem:[#allocation7 + $0x2c] sm:$0xf]
    %v396 = vld [vmem:[#allocation7 + $0x30] sm:$0xf]
    %v397 = vld [vmem:[#allocation7 + $0x34] sm:$0xf]
    %v398 = vld [vmem:[#allocation7 + $0x38] sm:$0xf]
    %v399 = vld [vmem:[#allocation7 + $0x3c] sm:$0xf]
    %v400 = vld [vmem:[%s8] sm:$0x1]
    %v402 = vperm.slane %v400, 0
    %v420 = vunpack.c.l.b16 %v384
    %v421 = vunpack.c.l.b16 %v385
    %v422 = vunpack.c.l.b16 %v386
    %v423 = vunpack.c.l.b16 %v387
    %v424 = vunpack.c.l.b16 %v388
    %v425 = vunpack.c.l.b16 %v389
    %v426 = vunpack.c.l.b16 %v390
    %v427 = vunpack.c.l.b16 %v391
    %v428 = vunpack.c.l.b16 %v392
    %v429 = vunpack.c.l.b16 %v393
    %v430 = vunpack.c.l.b16 %v394
    %v431 = vunpack.c.l.b16 %v395
    %v432 = vunpack.c.l.b16 %v396
    %v433 = vunpack.c.l.b16 %v397
    %v434 = vunpack.c.l.b16 %v398
    %v435 = vunpack.c.l.b16 %v399
    %v436 = vpack.c.b16 %v421, %v420
    %v437 = vpack.c.b16 %v423, %v422
    %v438 = vpack.c.b16 %v425, %v424
    %v439 = vpack.c.b16 %v427, %v426
    %v440 = vpack.c.b16 %v429, %v428
    %v441 = vpack.c.b16 %v431, %v430
    %v442 = vpack.c.b16 %v433, %v432
    %v443 = vpack.c.b16 %v435, %v434
    %452 = vmatpush.bf16.msra.mxu0 %v443
    %453 = vmatpush.bf16.msra.mxu0 %v442
    %454 = vmatpush.bf16.msra.mxu0 %v441
    %455 = vmatpush.bf16.msra.mxu0 %v440
    %456 = vmatpush.bf16.msra.mxu0 %v439
    %457 = vmatpush.bf16.msra.mxu0 %v438
    %458 = vmatpush.bf16.msra.mxu0 %v437
    %459 = vmatpush.bf16.msra.mxu0 %v436
    %460 = vmatmul.bf16.gmra.mxu0 %v383
    %v461 = vpop.f32.mrf.mxu0
    %v462 = vadd.f32 %v402, %v461
    %v463 = vpop.f32.mrf.mxu0
    %464 = vdwg.mxu0
    %v465 = vmax.f32 %v462, 0.0
    %466 = vst [vmem:[#allocation8] sm:$0xff] %v465
    // Predicated region
    $region50: #{mlp_forward.1} parent=1 // pred_check
      _
    $region51: #{mlp_forward.1} parent=1 // pred_check_branch
      %468 = sbr.rel (0) target = $region53
    $region52: #{mlp_forward.1} parent=1 // pred_region
      %470 = vsyncadd [#allocation4], 0
      %s472 = sshll.u32 [#allocation8], 4
      %s473 = int_to_ptr.vmem [resolvable:$true] %s472
      %s474 = sshll.u32 %s9, 4
      %s475 = int_to_ptr.hbm [resolvable:$true] %s474
      %477 = dma.vmem_to_hbm [thread:$0]  %s473, 128, %s475, [#allocation4]
    $region53: #{mlp_forward.1} parent=1 // pred_fallthru
      _
    // Predicated region
    $region54: #{mlp_forward.1} parent=1 // pred_check
      _
    $region55: #{mlp_forward.1} parent=1 // pred_check_branch
      %479 = sbr.rel (0) target = $region57
    $region56: #{mlp_forward.1} parent=1 // pred_region
      %481 = dma.done [#allocation4], 128
    $region57: #{mlp_forward.1} parent=1 // pred_fallthru
      _
    %482 = vsyncpa [#allocation3], 1
    %483 = vsyncpa [#allocation6], 1
    %484 = vsyncpa [#allocation4], 1

</llo_original>
